<compile_context>
chip_gen: v5e
topology: v5e:2x2
jax: 0.10.0
libtpu: 0.0.40
codegen_flags: <defaults>
</compile_context>

<pallas_src>
import functools

import jax
import jax.numpy as jnp
from jax.experimental import pallas as pl
from jax.experimental.pallas import tpu as pltpu


# ----------------------------- helpers ---------------------------------------

def _round_up(x, m):
    return ((x + m - 1) // m) * m


_VMEM_STEP_BUDGET = 20 * 1024 * 1024  # per-grid-step working set target


def _step_vmem_bytes(tn, te, f):
    act = 2 * 2 * tn * f * 4        # A and B input tiles, double-buffered, f32
    wgt = 2 * (2 * f) * te * 2      # weight tile buffers, bf16
    out = 2 * tn * te * 4           # output tile, double-buffered, f32
    return act + wgt + out


def _tile_plan(n, f, e):
    """Pick (tn, te): biggest tiles that keep the step under the VMEM budget."""
    tn = min(512, _round_up(n, 8))
    te = e
    # Tile E only when over budget (halves stay multiples of 128).  E is the
    # outer grid axis, so each weight tile is still fetched exactly once.
    while _step_vmem_bytes(tn, te, f) > _VMEM_STEP_BUDGET and te % 256 == 0:
        te //= 2
    # Last resort: shrink the N tile (stays a multiple of 8).
    while _step_vmem_bytes(tn, te, f) > _VMEM_STEP_BUDGET and tn > 8:
        tn = max(8, _round_up(tn // 2, 8))
    return tn, te


def _vmem_limit_bytes(tn, te, f):
    # Generous headroom over the plan; capped well under v7x's 64 MiB physical.
    return int(min(48 * 1024 * 1024,
                   max(16 * 1024 * 1024, 2 * _step_vmem_bytes(tn, te, f))))


# ----------------------------- Pallas kernels ---------------------------------

def _encode_kernel_fused(a_ref, b_ref, w_ref, o_ref):
    """o = relu(cat(A, B) @ W) as a single K=2F MXU pass (F % 128 == 0).

    A, B : [tn, F]  f32  (cast to bf16 on the VPU, under the DMA)
    W    : [2F, te] bf16
    o    : [tn, te] f32
    """
    a = a_ref[...].astype(jnp.bfloat16)
    b = b_ref[...].astype(jnp.bfloat16)
    ab = jnp.concatenate([a, b], axis=1)                      # lane-aligned
    acc = jnp.dot(ab, w_ref[...], preferred_element_type=jnp.float32)
    o_ref[...] = jnp.maximum(acc, 0.0).astype(o_ref.dtype)


def _encode_kernel_split(a_ref, b_ref, wt_ref, wb_ref, o_ref):
    """o = relu(A @ W_top + B @ W_bot) with exact (unpadded) K = F per dot.

    A, B         : [tn, F]  f32
    W_top, W_bot : [F, te]  bf16
    o            : [tn, te] f32
    """
    a = a_ref[...].astype(jnp.bfloat16)
    b = b_ref[...].astype(jnp.bfloat16)
    acc = jnp.dot(a, wt_ref[...], preferred_element_type=jnp.float32)
    acc = acc + jnp.dot(b, wb_ref[...], preferred_element_type=jnp.float32)
    o_ref[...] = jnp.maximum(acc, 0.0).astype(o_ref.dtype)


# ----------------------------- wrapper -----------------------------------------

@functools.partial(jax.jit, static_argnames=("fused",))
def heteedge_encode(edges_attr, edges_nb_attr, *weights, fused):
    """relu(cat([edges_attr, edges_nb_attr], 1) @ weight) via Pallas.

    edges_attr    : [N, F] f32
    edges_nb_attr : [N, F] f32
    weights       : (W,) with W [2F, E] bf16 if fused, else (W_top, W_bot)
                    each [F, E] bf16 — prepared once at module construction.
    returns       : [N, E] f32 (exact shape, no padding to slice off)
    """
    n, f = edges_attr.shape
    e = weights[0].shape[-1]

    tn, te = _tile_plan(n, f, e)
    grid = (e // te, pl.cdiv(n, tn))          # (E tiles [outer], N tiles [inner])

    act_spec = pl.BlockSpec((tn, f), lambda j, i: (i, 0))
    if fused:
        kernel = _encode_kernel_fused
        w_specs = [pl.BlockSpec((2 * f, te), lambda j, i: (0, j))]
    else:
        kernel = _encode_kernel_split
        w_specs = [pl.BlockSpec((f, te), lambda j, i: (0, j)),
                   pl.BlockSpec((f, te), lambda j, i: (0, j))]

    return pl.pallas_call(
        kernel,
        out_shape=jax.ShapeDtypeStruct((n, e), jnp.float32),
        grid_spec=pltpu.PrefetchScalarGridSpec(
            num_scalar_prefetch=0,
            grid=grid,
            in_specs=[act_spec, act_spec] + w_specs,
            out_specs=pl.BlockSpec((tn, te), lambda j, i: (i, j)),
        ),
        compiler_params=pltpu.CompilerParams(
            dimension_semantics=("parallel", "parallel"),
            vmem_limit_bytes=_vmem_limit_bytes(tn, te, f),
        ),
    )(edges_attr, edges_nb_attr, *weights)


# --------------------------- Module-level glue ----------------------------------

def xavier_uniform(key, shape, dtype=jnp.float32):
    fan_in, fan_out = shape
    limit = jnp.sqrt(6.0 / (fan_in + fan_out))
    return jax.random.uniform(key, shape, dtype, minval=-limit, maxval=limit)


class HeteEdgeEncoderJax:
    """JAX/Pallas port of HeteEdgeEncoder.

    The edge cache is a single preallocated device matrix (capacity-doubled,
    appended with dynamic_update_slice) plus a python edge -> row-index map,
    so the forward output is one device gather.
    """

    def __init__(self, feature_dim, embed_dim, aggregator, *, key,
                 layer=1, dropout=-1, aggre_type="maxpool"):
        self.feat_dim = feature_dim
        self.embed_dim = embed_dim
        self.aggregator = aggregator
        self.layer = layer
        self.dropout_value = dropout
        self.aggre_type = aggre_type
        # nn.Parameter(Tensor(2*feat_dim, embed_dim)) + xavier_uniform_
        self.weight = xavier_uniform(key, (2 * feature_dim, embed_dim))
        # Prepare MXU-ready weights ONCE: bf16, exact shapes, no K padding.
        self._fused = (feature_dim % 128 == 0)
        if self._fused:
            self._weights = (self.weight.astype(jnp.bfloat16),)
        else:
            self._weights = (self.weight[:feature_dim].astype(jnp.bfloat16),
                             self.weight[feature_dim:].astype(jnp.bfloat16))
        # Device-side cache of encoded edges.
        self._edge_to_row = {}
        self._cache = None   # [capacity, embed_dim] f32
        self._size = 0
        # TODO(synk): dropout (training-time RNG) not applied; default dropout=-1 disables it.
        # TODO(synk): tiny batches (N << 128) could bypass pallas_call fixed overhead via plain jnp.

    def _append_rows(self, activate):
        """Append new rows to the cache in O(new rows) amortized HBM traffic."""
        k = activate.shape[0]
        needed = self._size + k
        cap = 0 if self._cache is None else self._cache.shape[0]
        if needed > cap:
            new_cap = max(needed, 2 * cap, 8)
            new_cache = jnp.zeros((new_cap, self.embed_dim), jnp.float32)
            if self._size > 0:
                new_cache = new_cache.at[:self._size].set(self._cache[:self._size])
            self._cache = new_cache
        self._cache = jax.lax.dynamic_update_slice(
            self._cache, activate, (self._size, 0))
        base = self._size
        self._size = needed
        return base

    def forward(self, edges):
        none_edges = [e for e in edges if e not in self._edge_to_row]
        if len(none_edges) > 0:
            edges_attr, edges_nb_attr = self.aggregator(none_edges)
            activate = heteedge_encode(edges_attr, edges_nb_attr,
                                       *self._weights, fused=self._fused)
            base = self._append_rows(activate)
            for index, edge in enumerate(none_edges):
                self._edge_to_row[edge] = base + index
        rows = jnp.asarray([self._edge_to_row[e] for e in edges],
                           dtype=jnp.int32)
        return self._cache[rows]   # single device gather


# --------------------------------- Demo ------------------------------------------

if __name__ == "__main__":
    key = jax.random.PRNGKey(0)
    k_w, k_feat, k_nb = jax.random.split(key, 3)

    # Small, module-consistent shapes.
    N_EDGES = 16      # total edges backing the synthetic graph
    FEAT_DIM = 32     # feature_dim
    EMBED_DIM = 32    # embed_dim

    # Deterministic synthetic feature tables backing the aggregator.
    edge_feature_table = jax.random.normal(k_feat, (N_EDGES, FEAT_DIM),
                                           dtype=jnp.float32)
    neighbor_feature_table = jax.random.normal(k_nb, (N_EDGES, 4, FEAT_DIM),
                                               dtype=jnp.float32)

    def maxpool_aggregator(edge_ids):
        idx = jnp.asarray(edge_ids, dtype=jnp.int32)
        edges_attr = edge_feature_table[idx]                        # [n, F]
        edges_nb_attr = jnp.max(neighbor_feature_table[idx], axis=1)  # [n, F]
        return edges_attr, edges_nb_attr

    enc = HeteEdgeEncoderJax(FEAT_DIM, EMBED_DIM, maxpool_aggregator,
                             key=k_w, layer=1, dropout=-1,
                             aggre_type="maxpool")

    batch1 = list(range(8))            # first batch: 8 new edges -> kernel
    batch2 = list(range(8, 16))        # second batch: 8 more -> kernel + cache grow
    all_edges = list(range(N_EDGES))   # third call: pure device-cache gather

    out1 = jax.block_until_ready(enc.forward(batch1))
    out2 = jax.block_until_ready(enc.forward(batch2))
    out_all = jax.block_until_ready(enc.forward(all_edges))

    # Reference in plain JAX (f32): relu(cat @ W).  Kernel uses bf16 MXU inputs
    # with f32 accumulation, so compare with a loose tolerance.
    ea, enb = maxpool_aggregator(all_edges)
    ref = jnp.maximum(jnp.concatenate([ea, enb], axis=1) @ enc.weight, 0.0)

    assert out_all.shape == (N_EDGES, EMBED_DIM)
    assert jnp.allclose(out_all, ref, atol=5e-2, rtol=5e-2), (
        float(jnp.max(jnp.abs(out_all - ref))))
    assert jnp.allclose(out1, ref[:8], atol=5e-2, rtol=5e-2)
    assert jnp.allclose(out2, ref[8:], atol=5e-2, rtol=5e-2)

    print("KERNEL_OK")
</pallas_src>

<mosaic_0001>
module attributes {stable_mosaic.version = 11 : i64} {
  func.func @_encode_kernel_split(%arg0: i32, %arg1: i32, %arg2: memref<8x32xf32, #tpu.memory_space<vmem>>, %arg3: memref<8x32xf32, #tpu.memory_space<vmem>>, %arg4: memref<32x32xbf16, #tpu.memory_space<vmem>>, %arg5: memref<32x32xbf16, #tpu.memory_space<vmem>>, %arg6: memref<8x32xf32, #tpu.memory_space<vmem>>) attributes {dimension_semantics = [#tpu.dimension_semantics<parallel>, #tpu.dimension_semantics<parallel>], iteration_bounds = array<i64: 1, 1>, scalar_prefetch = 0 : i64, scratch_operands = 0 : i64, tpu.core_type = #tpu.core_type<tc>, window_params = [{transform_indices = @transform_0, window_bounds = array<i64: 8, 32>}, {transform_indices = @transform_1, window_bounds = array<i64: 8, 32>}, {transform_indices = @transform_2, window_bounds = array<i64: 32, 32>}, {transform_indices = @transform_3, window_bounds = array<i64: 32, 32>}, {transform_indices = @transform_4, window_bounds = array<i64: 8, 32>}]} {
    %c0 = arith.constant 0 : index
    %c0_0 = arith.constant 0 : index
    %0 = vector.load %arg2[%c0, %c0_0] : memref<8x32xf32, #tpu.memory_space<vmem>>, vector<8x32xf32>
    %1 = arith.truncf %0 : vector<8x32xf32> to vector<8x32xbf16>
    %c0_1 = arith.constant 0 : index
    %c0_2 = arith.constant 0 : index
    %2 = vector.load %arg3[%c0_1, %c0_2] : memref<8x32xf32, #tpu.memory_space<vmem>>, vector<8x32xf32>
    %3 = arith.truncf %2 : vector<8x32xf32> to vector<8x32xbf16>
    %c0_3 = arith.constant 0 : index
    %c0_4 = arith.constant 0 : index
    %4 = vector.load %arg4[%c0_3, %c0_4] : memref<32x32xbf16, #tpu.memory_space<vmem>>, vector<32x32xbf16>
    %cst = arith.constant dense<0.000000e+00> : vector<8x32xf32>
    %5 = tpu.matmul %1, %4, %cst {dimension_numbers = #tpu.dot_dimension_numbers<[1], [0], [0], [1], [0, 0, 1, 1], [], []>} : vector<8x32xbf16>, vector<32x32xbf16>, vector<8x32xf32> -> vector<8x32xf32>
    %c0_5 = arith.constant 0 : index
    %c0_6 = arith.constant 0 : index
    %6 = vector.load %arg5[%c0_5, %c0_6] : memref<32x32xbf16, #tpu.memory_space<vmem>>, vector<32x32xbf16>
    %cst_7 = arith.constant dense<0.000000e+00> : vector<8x32xf32>
    %7 = tpu.matmul %3, %6, %cst_7 {dimension_numbers = #tpu.dot_dimension_numbers<[1], [0], [0], [1], [0, 0, 1, 1], [], []>} : vector<8x32xbf16>, vector<32x32xbf16>, vector<8x32xf32> -> vector<8x32xf32>
    %8 = arith.addf %5, %7 : vector<8x32xf32>
    %cst_8 = arith.constant 0.000000e+00 : f32
    %9 = vector.broadcast %cst_8 : f32 to vector<8x32xf32>
    %10 = arith.maximumf %8, %9 : vector<8x32xf32>
    %c0_9 = arith.constant 0 : index
    %c0_10 = arith.constant 0 : index
    %11 = vector.load %arg6[%c0_9, %c0_10] : memref<8x32xf32, #tpu.memory_space<vmem>>, vector<8x32xf32>
    tpu.vector_store %arg6[%c0_9, %c0_10], %10 {strides = array<i32>} : memref<8x32xf32, #tpu.memory_space<vmem>>, vector<8x32xf32>,
    return
  }
  func.func @transform_0(%arg0: i32, %arg1: i32) -> (i32, i32) {
    %c0_i32 = arith.constant 0 : i32
    %c0_i32_0 = arith.constant 0 : i32
    return %arg1, %c0_i32 : i32, i32
  }
  func.func @transform_1(%arg0: i32, %arg1: i32) -> (i32, i32) {
    %c0_i32 = arith.constant 0 : i32
    %c0_i32_0 = arith.constant 0 : i32
    return %arg1, %c0_i32 : i32, i32
  }
  func.func @transform_2(%arg0: i32, %arg1: i32) -> (i32, i32) {
    %c0_i32 = arith.constant 0 : i32
    %c0_i32_0 = arith.constant 0 : i32
    return %c0_i32, %arg0 : i32, i32
  }
  func.func @transform_3(%arg0: i32, %arg1: i32) -> (i32, i32) {
    %c0_i32 = arith.constant 0 : i32
    %c0_i32_0 = arith.constant 0 : i32
    return %c0_i32, %arg0 : i32, i32
  }
  func.func @transform_4(%arg0: i32, %arg1: i32) -> (i32, i32) {
    %c0_i32 = arith.constant 0 : i32
    return %arg1, %arg0 : i32, i32
  }
}

</mosaic_0001>

<llo_original>
// kernel: heteedge_encode.1
$region0: #{heteedge_encode.1}
  #allocation0 [shape = 'u32[]', space=smem, size = 0x4, offset = 0x4, fixed_abs, tag = 'smem constant byte address 0x4 - core index']
  #allocation1 [shape = 'u32[72,128]{1,0:T(1,128)}', space=vmem, size = 0x9000, scoped, tag = 'internal scratch']
  %s0 = inlined_call_operand.hbm [shape: f32[8,32], index: 0, kind: input, shape index: {}]
  %s1 = inlined_call_operand.hbm [shape: f32[8,32], index: 1, kind: input, shape index: {}]
  %s2 = inlined_call_operand.hbm [shape: bf16[32,32], index: 2, kind: input, shape index: {}]
  %s3 = inlined_call_operand.hbm [shape: bf16[32,32], index: 3, kind: input, shape index: {}]
  %s4 = inlined_call_operand.hbm [shape: f32[8,32], index: 4, kind: output, shape index: {}]
  %s5 = sld [smem:[#allocation0]]
  $region42: #{heteedge_encode.1} parent=0
    _
  %s7 = ssub.s32 1, %s5
  %s8 = scalar_select 0, %s7, %s5
  $region1: #{heteedge_encode.1} parent=0
    #allocation2 [shape = 'u8[4096]{0}', space=vmem, size = 0x1000, scoped, tag = 'input window, operand 0, single buffered']
    #allocation3 [shape = 's32[1]{0}', space=sflag, size = 0x4, scoped, tag = 'scoped memory for heteedge_encode.1']
    #allocation4 [shape = 's32[1]{0}', space=sflag, size = 0x4, scoped, tag = 'scoped memory for heteedge_encode.1']
    #allocation5 [shape = 'u8[4096]{0}', space=vmem, size = 0x1000, scoped, tag = 'input window, operand 1, single buffered']
    #allocation6 [shape = 's32[1]{0}', space=sflag, size = 0x4, scoped, tag = 'scoped memory for heteedge_encode.1']
    #allocation7 [shape = 'u8[8192]{0}', space=vmem, size = 0x2000, scoped, tag = 'input window, operand 2, single buffered']
    #allocation8 [shape = 'u8[8192]{0}', space=vmem, size = 0x2000, scoped, tag = 'input window, operand 3, single buffered']
    #allocation9 [shape = 's32[1]{0}', space=sflag, size = 0x4, scoped, tag = 'scoped memory for heteedge_encode.1']
    #allocation10 [shape = 'u8[4096]{0}', space=vmem, size = 0x1000, scoped, tag = 'output window, operand 0, single buffered']
    %9 = vsyncpa [#allocation3], 0
    %10 = vsyncpa [#allocation6], 0
    %11 = vsyncpa [#allocation9], 0
    %12 = vsyncpa [#allocation4], 0
    // Predicated region
    $region2: #{heteedge_encode.1} parent=1 // pred_check
      _
    $region3: #{heteedge_encode.1} parent=1 // pred_check_branch
      %14 = sbr.rel (0) target = $region5
    $region4: #{heteedge_encode.1} parent=1 // pred_region
      %16 = vsyncadd [#allocation3], 0
      %s18 = sshll.u32 %s0, 4
      %s19 = int_to_ptr.hbm [resolvable:$true] %s18
      %s20 = sshll.u32 [#allocation2], 4
      %s21 = int_to_ptr.vmem [resolvable:$true] %s20
      %23 = dma.hbm_to_vmem [thread:$0]  %s19, 128, %s21, [#allocation3]
    $region5: #{heteedge_encode.1} parent=1 // pred_fallthru
      _
    // Predicated region
    $region6: #{heteedge_encode.1} parent=1 // pred_check
      _
    $region7: #{heteedge_encode.1} parent=1 // pred_check_branch
      %25 = sbr.rel (0) target = $region9
    $region8: #{heteedge_encode.1} parent=1 // pred_region
      %27 = vsyncadd [#allocation6], 0
      %s29 = sshll.u32 %s1, 4
      %s30 = int_to_ptr.hbm [resolvable:$true] %s29
      %s31 = sshll.u32 [#allocation5], 4
      %s32 = int_to_ptr.vmem [resolvable:$true] %s31
      %34 = dma.hbm_to_vmem [thread:$0]  %s30, 128, %s32, [#allocation6]
    $region9: #{heteedge_encode.1} parent=1 // pred_fallthru
      _
    // Predicated region
    $region10: #{heteedge_encode.1} parent=1 // pred_check
      _
    $region11: #{heteedge_encode.1} parent=1 // pred_check_branch
      %36 = sbr.rel (0) target = $region13
    $region12: #{heteedge_encode.1} parent=1 // pred_region
      %38 = vsyncadd [#allocation6], 0
      %s39 = sshll.u32 %s2, 4
      %s40 = int_to_ptr.hbm [resolvable:$true] %s39
      %s41 = sshll.u32 [#allocation7], 4
      %s42 = int_to_ptr.vmem [resolvable:$true] %s41
      %47 = dma.hbm_to_vmem [thread:$0]  %s40, 256, %s42, [#allocation6], 64, 64, 4
    $region13: #{heteedge_encode.1} parent=1 // pred_fallthru
      _
    // Predicated region
    $region14: #{heteedge_encode.1} parent=1 // pred_check
      _
    $region15: #{heteedge_encode.1} parent=1 // pred_check_branch
      %49 = sbr.rel (0) target = $region17
    $region16: #{heteedge_encode.1} parent=1 // pred_region
      %51 = vsyncadd [#allocation9], 0
      %s52 = sshll.u32 %s3, 4
      %s53 = int_to_ptr.hbm [resolvable:$true] %s52
      %s54 = sshll.u32 [#allocation8], 4
      %s55 = int_to_ptr.vmem [resolvable:$true] %s54
      %60 = dma.hbm_to_vmem [thread:$0]  %s53, 256, %s55, [#allocation9], 64, 64, 4
    $region17: #{heteedge_encode.1} parent=1 // pred_fallthru
      _
    // Predicated region
    $region18: #{heteedge_encode.1} parent=1 // pred_check
      _
    $region19: #{heteedge_encode.1} parent=1 // pred_check_branch
      %62 = sbr.rel (0) target = $region21
    $region20: #{heteedge_encode.1} parent=1 // pred_region
      %64 = dma.done [#allocation3], 128
    $region21: #{heteedge_encode.1} parent=1 // pred_fallthru
      _
    // Predicated region
    $region22: #{heteedge_encode.1} parent=1 // pred_check
      _
    $region23: #{heteedge_encode.1} parent=1 // pred_check_branch
      %66 = sbr.rel (0) target = $region25
    $region24: #{heteedge_encode.1} parent=1 // pred_region
      %68 = dma.done [#allocation6], 128
    $region25: #{heteedge_encode.1} parent=1 // pred_fallthru
      _
    // Predicated region
    $region26: #{heteedge_encode.1} parent=1 // pred_check
      _
    $region27: #{heteedge_encode.1} parent=1 // pred_check_branch
      %70 = sbr.rel (0) target = $region29
    $region28: #{heteedge_encode.1} parent=1 // pred_region
      %72 = dma.done [#allocation6], 256
    $region29: #{heteedge_encode.1} parent=1 // pred_fallthru
      _
    // Predicated region
    $region30: #{heteedge_encode.1} parent=1 // pred_check
      _
    $region31: #{heteedge_encode.1} parent=1 // pred_check_branch
      %74 = sbr.rel (0) target = $region33
    $region32: #{heteedge_encode.1} parent=1 // pred_region
      %76 = dma.done [#allocation9], 256
    $region33: #{heteedge_encode.1} parent=1 // pred_fallthru
      _
    %v78 = vld [vmem:[#allocation2] sm:$0xff]
    %v79 = vpack.c.bf16 %v78, %v78
    %v80 = vld [vmem:[#allocation5] sm:$0xff]
    %v81 = vpack.c.bf16 %v80, %v80
    %v82 = vld [vmem:[#allocation7] sm:$0xf]
    %v83 = vld [vmem:[#allocation7 + $0x4] sm:$0xf]
    %v84 = vld [vmem:[#allocation7 + $0x8] sm:$0xf]
    %v85 = vld [vmem:[#allocation7 + $0xc] sm:$0xf]
    %v86 = vld [vmem:[#allocation8] sm:$0xf]
    %v87 = vld [vmem:[#allocation8 + $0x4] sm:$0xf]
    %v88 = vld [vmem:[#allocation8 + $0x8] sm:$0xf]
    %v89 = vld [vmem:[#allocation8 + $0xc] sm:$0xf]
    %v94 = vunpack.c.l.b16 %v86
    %v95 = vunpack.c.l.b16 %v87
    %v96 = vunpack.c.l.b16 %v88
    %v97 = vunpack.c.l.b16 %v89
    %v98 = vpack.c.b16 %v95, %v94
    %v99 = vpack.c.b16 %v97, %v96
    %vm102 = vcmask 261120
    %v104 = vsel %vm102, %v81, 0
    %106 = vmatpush.bf16.msra.mxu0 0
    %107 = vmatpush.bf16.msra.mxu0 0
    %108 = vmatpush.bf16.msra.mxu0 0
    %109 = vmatpush.bf16.msra.mxu0 0
    %110 = vmatpush.bf16.msra.mxu0 0
    %111 = vmatpush.bf16.msra.mxu0 0
    %112 = vmatpush.bf16.msra.mxu0 %v99
    %113 = vmatpush.bf16.msra.mxu0 %v98
    %114 = vmatmul.bf16.gmra.mxu0 %v104
    %v115 = vpop.f32.mrf.mxu0
    %v116 = vadd.f32 0.0, %v115
    %v117 = vpop.f32.mrf.mxu0
    %118 = vdwg.mxu0
    %v123 = vunpack.c.l.b16 %v82
    %v124 = vunpack.c.l.b16 %v83
    %v125 = vunpack.c.l.b16 %v84
    %v126 = vunpack.c.l.b16 %v85
    %v127 = vpack.c.b16 %v124, %v123
    %v128 = vpack.c.b16 %v126, %v125
    %v132 = vsel %vm102, %v79, 0
    %134 = vmatpush.bf16.msra.mxu0 0
    %135 = vmatpush.bf16.msra.mxu0 0
    %136 = vmatpush.bf16.msra.mxu0 0
    %137 = vmatpush.bf16.msra.mxu0 0
    %138 = vmatpush.bf16.msra.mxu0 0
    %139 = vmatpush.bf16.msra.mxu0 0
    %140 = vmatpush.bf16.msra.mxu0 %v128
    %141 = vmatpush.bf16.msra.mxu0 %v127
    %142 = vmatmul.bf16.gmra.mxu0 %v132
    %v143 = vpop.f32.mrf.mxu0
    %v144 = vadd.f32 %v116, %v143
    %v145 = vpop.f32.mrf.mxu0
    %146 = vdwg.mxu0
    %v147 = vmax.f32 %v144, 0.0
    %148 = vst.msk [vmem:[#allocation10] sm:$0xff] %vm102, %v147
    // Predicated region
    $region34: #{heteedge_encode.1} parent=1 // pred_check
      _
    $region35: #{heteedge_encode.1} parent=1 // pred_check_branch
      %150 = sbr.rel (0) target = $region37
    $region36: #{heteedge_encode.1} parent=1 // pred_region
      %152 = vsyncadd [#allocation4], 0
      %s154 = sshll.u32 [#allocation10], 4
      %s155 = int_to_ptr.vmem [resolvable:$true] %s154
      %s156 = sshll.u32 %s4, 4
      %s157 = int_to_ptr.hbm [resolvable:$true] %s156
      %159 = dma.vmem_to_hbm [thread:$0]  %s155, 128, %s157, [#allocation4]
    $region37: #{heteedge_encode.1} parent=1 // pred_fallthru
      _
    // Predicated region
    $region38: #{heteedge_encode.1} parent=1 // pred_check
      _
    $region39: #{heteedge_encode.1} parent=1 // pred_check_branch
      %161 = sbr.rel (0) target = $region41
    $region40: #{heteedge_encode.1} parent=1 // pred_region
      %163 = dma.done [#allocation4], 128
    $region41: #{heteedge_encode.1} parent=1 // pred_fallthru
      _
    %164 = vsyncpa [#allocation3], 1
    %165 = vsyncpa [#allocation6], 1
    %166 = vsyncpa [#allocation9], 1
    %167 = vsyncpa [#allocation4], 1

</llo_original>
